<compile_context>
chip_gen: v7x
topology: tpu7x:2x2x1
jax: 0.10.0
libtpu: 0.0.40
codegen_flags: <defaults>
</compile_context>

<pallas_src>
import functools
import math

import jax
import jax.numpy as jnp
from jax.experimental import pallas as pl
from jax.experimental.pallas import tpu as pltpu

_LANE = 128
_SUBLANE = 8
_ONEHOT_MAX_VOCAB = 256      # <= this vocab: one-hot MXU path; above: DMA row gather
_GATHER_MAX_GROUP = 128      # rows gathered per grid step (static DMA unroll cap)


def _round_up(x: int, m: int) -> int:
    return (x + m - 1) // m * m


def _pad_to(a: jax.Array, shape) -> jax.Array:
    pads = [(0, s - d) for d, s in zip(a.shape, shape)]
    return jnp.pad(a, pads) if any(p for _, p in pads) else a


def _vmem_budget_and_limit():
    """Per-generation VMEM sizing: ~48/64 MiB scoped on v5e/v6e (128 MiB VMEM),
    ~24/32 MiB on v7x (64 MiB per TC)."""
    try:
        cap = int(pltpu.get_tpu_info().vmem_capacity_bytes)
    except Exception:  # pragma: no cover - conservative fallback
        cap = 64 * 1024 * 1024
    limit = min(cap // 2, 64 * 1024 * 1024)
    budget = (limit * 3) // 4
    return budget, limit


def _pick_tile_n(n, need_bytes, budget, candidates=(1024, 512, 256, 128, 64, 32, 16, 8)):
    """Largest row tile (multiple of 8, biased to >=256 for the MXU) fitting the budget."""
    cap = max(_SUBLANE, _round_up(n, _SUBLANE))
    t = _SUBLANE
    for c in candidates:
        t = min(c, cap)
        if need_bytes(t) <= budget:
            return t
    return t


def _pick_tile_k(dimp):
    """128-multiple divisor of dimp (dimp is already a multiple of 128)."""
    for c in (512, 384, 256, 128):
        if c <= dimp and dimp % c == 0:
            return c
    return dimp


# ----------------------------- Linear projection -----------------------------

def _linear_resident_kernel(x_ref, w_ref, b_ref, o_ref, *, mxu_dtype):
    # Weight (already stored in compute dtype) and bias stay VMEM-resident; x / out
    # are row-tiled and double-buffered by the BlockSpec pipeline.  Single K step,
    # f32 accumulation via preferred_element_type.
    x = x_ref[...]
    if mxu_dtype is not None:
        x = x.astype(mxu_dtype)
    acc = jnp.dot(x, w_ref[...], preferred_element_type=jnp.float32)
    o_ref[...] = (acc + b_ref[...].astype(jnp.float32)).astype(o_ref.dtype)


def _linear_ktiled_kernel(x_ref, w_ref, b_ref, o_ref, acc_ref, *, mxu_dtype):
    # Fallback for weights too big to keep resident: K-tiled with f32 VMEM accumulator.
    k = pl.program_id(1)

    @pl.when(k == 0)
    def _():
        acc_ref[...] = jnp.zeros_like(acc_ref)

    x = x_ref[...]
    if mxu_dtype is not None:
        x = x.astype(mxu_dtype)
    acc_ref[...] += jnp.dot(x, w_ref[...], preferred_element_type=jnp.float32)

    @pl.when(k == pl.num_programs(1) - 1)
    def _():
        o_ref[...] = (acc_ref[...] + b_ref[...].astype(jnp.float32)).astype(o_ref.dtype)


# ------------------------ Embedding: small vocab (one-hot MXU) ------------------------

def _onehot_embed_kernel(ids_ref, table_ref, o_ref, *, mxu_dtype):
    # ids: (tile_n, 1) int32; table resident (vocab, out_p); o: (tile_n, out_p)
    ids = ids_ref[...]
    vocab = table_ref.shape[0]
    dt = mxu_dtype if mxu_dtype is not None else table_ref.dtype
    iota = jax.lax.broadcasted_iota(jnp.int32, (ids.shape[0], vocab), 1)
    onehot = (iota == ids).astype(dt)
    o_ref[...] = jnp.dot(onehot, table_ref[...],
                         preferred_element_type=jnp.float32).astype(o_ref.dtype)


# -------------------- Embedding: large vocab (SMEM ids + DMA row gather) --------------------

def _gather_embed_kernel(ids_ref, table_hbm, o_ref, sems):
    # ids_ref: SMEM (n_pad,) int32 (scalar prefetch); table_hbm: HBM (vocab, out_p);
    # o_ref: (gsz, out_p) pipelined output block.  Rows are DMA'd straight into the
    # output block (no VMEM->VMEM staging copy); all row DMAs are issued before any
    # wait so they run concurrently, and the block's HBM writeback overlaps the next
    # grid step's gathers via the output pipeline.
    g = pl.program_id(0)
    gsz = o_ref.shape[0]
    base = g * gsz
    copies = []
    for r in range(gsz):                           # static unroll
        tok = ids_ref[base + r]
        cp = pltpu.make_async_copy(table_hbm.at[pl.ds(tok, 1)],
                                   o_ref.at[pl.ds(r, 1)], sems.at[r])
        cp.start()
        copies.append(cp)
    for cp in copies:                              # wait on the exact started descriptors
        cp.wait()
    # TODO(synk): cross-step prefetch (issue group i+1's row DMAs before waiting on
    # group i) needs a manual output double-buffer; left to the auto output pipeline.


# ----------------------------- Module wrapper -------------------------------

class BaseConditioner:
    """JAX/Pallas port of SongBloom's BaseConditioner.

    output_proj is either Linear(dim -> output_dim) or Embedding(vocab=dim, output_dim,
    padding_idx). `compute_dtype=jnp.bfloat16` stores the projection weight / LUT in
    bf16 and feeds bf16 MXU operands (f32 accumulation) for v5e/v6e/v7x throughput;
    default None keeps f32 parameters and numerics.
    """

    def __init__(self, dim: int, output_dim: int, input_token: bool = False,
                 padding_idx=None, *, key: jax.Array, compute_dtype=None,
                 _force_ktiled: bool = False):
        self.dim = dim
        self.output_dim = output_dim
        self.input_token = input_token
        self.padding_idx = padding_idx
        self.compute_dtype = compute_dtype

        self._budget, self._vmem_limit = _vmem_budget_and_limit()
        self._outp = _round_up(output_dim, _LANE)
        store_dtype = compute_dtype if compute_dtype is not None else jnp.float32
        self._store_dtype = store_dtype
        store_itemsize = jnp.dtype(store_dtype).itemsize

        if input_token:
            # nn.Embedding default init: N(0, 1); padding_idx row zeroed.
            w = jax.random.normal(key, (dim, output_dim), jnp.float32)
            if padding_idx is not None:
                w = w.at[padding_idx].set(0.0)
            self.emb_table = w                      # unpadded f32 reference copy
            # padded (lane-dense), optionally bf16 LUT -- computed once, cached
            self._table_p = _pad_to(w.astype(store_dtype), (dim, self._outp))
            self._use_onehot = dim <= _ONEHOT_MAX_VOCAB
            self.weight = None
            self.bias = None
        else:
            # nn.Linear default init: U(-k, k) with k = 1/sqrt(fan_in).
            k = 1.0 / math.sqrt(dim)
            wk, bk = jax.random.split(key)
            # stored already transposed: [dim, output_dim] so kernel does x @ W
            self.weight = jax.random.uniform(wk, (dim, output_dim),
                                             minval=-k, maxval=k, dtype=jnp.float32)
            self.bias = jax.random.uniform(bk, (output_dim,),
                                           minval=-k, maxval=k, dtype=jnp.float32)
            self.emb_table = None

            w_bytes = dim * self._outp * store_itemsize
            self._w_resident = (not _force_ktiled) and (w_bytes <= self._budget // 2)
            if self._w_resident:
                self._dimp = dim
                self._tile_k = dim
                self._w_p = _pad_to(self.weight.astype(store_dtype), (dim, self._outp))
            else:
                self._dimp = _round_up(dim, _LANE)
                self._tile_k = _pick_tile_k(self._dimp)
                self._w_p = _pad_to(self.weight.astype(store_dtype),
                                    (self._dimp, self._outp))
            self._b_p = _pad_to(self.bias.reshape(1, output_dim).astype(jnp.float32),
                                (1, self._outp))

    # --------------------------------------------------------------------- #

    def tokenize(self, *args, **kwargs):
        # TODO(synk): tokenize() is abstract in the reference (tokenizer-specific, host-side).
        raise NotImplementedError()

    # ------------------------------- linear ------------------------------- #

    def _linear_forward(self, x2d: jax.Array) -> jax.Array:
        n, dim = x2d.shape
        outp = self._outp
        f32 = 4
        w_bytes = int(self._w_p.size) * self._w_p.dtype.itemsize

        if self._w_resident:
            # double-buffered x + double-buffered out + resident weight + bias
            need = lambda t: f32 * (2 * t * dim + 2 * t * outp) + w_bytes + f32 * outp
            tile_n = _pick_tile_n(n, need, self._budget)
            cost = pl.CostEstimate(
                flops=2 * n * dim * outp, transcendentals=0,
                bytes_accessed=f32 * n * dim + w_bytes + f32 * outp + f32 * n * outp)
            out2d = pl.pallas_call(
                functools.partial(_linear_resident_kernel, mxu_dtype=self.compute_dtype),
                out_shape=jax.ShapeDtypeStruct((n, outp), x2d.dtype),
                grid=(pl.cdiv(n, tile_n),),
                in_specs=[
                    pl.BlockSpec((tile_n, dim), lambda i: (i, 0)),
                    pl.BlockSpec((dim, outp), lambda i: (0, 0)),      # resident weight
                    pl.BlockSpec((1, outp), lambda i: (0, 0)),        # resident bias
                ],
                out_specs=pl.BlockSpec((tile_n, outp), lambda i: (i, 0)),
                compiler_params=pltpu.CompilerParams(
                    dimension_semantics=("parallel",),
                    vmem_limit_bytes=self._vmem_limit),
                cost_estimate=cost,
            )(x2d, self._w_p, self._b_p)
        else:
            dimp, tile_k = self._dimp, self._tile_k
            xp = x2d if dim == dimp else jnp.pad(x2d, ((0, 0), (0, dimp - dim)))
            w_itemsize = self._w_p.dtype.itemsize
            need = lambda t: (f32 * (2 * t * tile_k + 2 * t * outp + t * outp + outp)
                              + 2 * tile_k * outp * w_itemsize)
            tile_n = _pick_tile_n(n, need, self._budget)
            n_rows = pl.cdiv(n, tile_n)
            cost = pl.CostEstimate(
                flops=2 * n * dimp * outp, transcendentals=0,
                # weight is re-streamed once per row tile under K tiling
                bytes_accessed=(f32 * n * dimp + n_rows * w_bytes
                                + f32 * outp + f32 * n * outp))
            out2d = pl.pallas_call(
                functools.partial(_linear_ktiled_kernel, mxu_dtype=self.compute_dtype),
                out_shape=jax.ShapeDtypeStruct((n, outp), x2d.dtype),
                grid=(n_rows, dimp // tile_k),
                in_specs=[
                    pl.BlockSpec((tile_n, tile_k), lambda i, k: (i, k)),
                    pl.BlockSpec((tile_k, outp), lambda i, k: (k, 0)),
                    pl.BlockSpec((1, outp), lambda i, k: (0, 0)),
                ],
                out_specs=pl.BlockSpec((tile_n, outp), lambda i, k: (i, 0)),
                scratch_shapes=[pltpu.VMEM((tile_n, outp), jnp.float32)],
                compiler_params=pltpu.CompilerParams(
                    dimension_semantics=("parallel", "arbitrary"),
                    vmem_limit_bytes=self._vmem_limit),
                cost_estimate=cost,
            )(xp, self._w_p, self._b_p)

        if outp != self.output_dim:
            out2d = out2d[:, :self.output_dim]
        return out2d

    # ----------------------------- embedding ------------------------------ #

    def _embed_onehot(self, ids1d: jax.Array) -> jax.Array:
        n = ids1d.shape[0]
        vocab = self.dim
        outp = self._outp
        f32 = 4
        tab_bytes = int(self._table_p.size) * self._table_p.dtype.itemsize
        # resident LUT + one-hot intermediate; row tile capped at 256 (VALU/spill pressure)
        need = lambda t: tab_bytes + f32 * (2 * t + t * vocab + 2 * t * outp)
        tile_n = _pick_tile_n(n, need, self._budget,
                              candidates=(256, 128, 64, 32, 16, 8))
        ids2d = ids1d.astype(jnp.int32).reshape(n, 1)
        cost = pl.CostEstimate(
            flops=2 * n * vocab * outp, transcendentals=0,
            bytes_accessed=4 * n + tab_bytes + f32 * n * outp)
        out2d = pl.pallas_call(
            functools.partial(_onehot_embed_kernel, mxu_dtype=self.compute_dtype),
            out_shape=jax.ShapeDtypeStruct((n, outp), self._table_p.dtype),
            grid=(pl.cdiv(n, tile_n),),
            in_specs=[
                pl.BlockSpec((tile_n, 1), lambda i: (i, 0)),
                pl.BlockSpec((vocab, outp), lambda i: (0, 0)),        # resident LUT
            ],
            out_specs=pl.BlockSpec((tile_n, outp), lambda i: (i, 0)),
            compiler_params=pltpu.CompilerParams(
                dimension_semantics=("parallel",),
                vmem_limit_bytes=self._vmem_limit),
            cost_estimate=cost,
        )(ids2d, self._table_p)
        if outp != self.output_dim:
            out2d = out2d[:, :self.output_dim]
        return out2d

    def _embed_gather(self, ids1d: jax.Array) -> jax.Array:
        n = ids1d.shape[0]
        outp = self._outp
        row_bytes = outp * self._table_p.dtype.itemsize
        # rows per grid step: amortize per-step overhead, bounded by the double-buffered
        # output block footprint and the static DMA unroll length.
        gsz = max(_SUBLANE, min(_GATHER_MAX_GROUP,
                                self._budget // max(1, 4 * row_bytes)))
        gsz = _round_up(gsz, _SUBLANE)
        gsz = min(gsz, _round_up(n, _SUBLANE))
        n_pad = _round_up(n, gsz)
        idsp = _pad_to(ids1d.astype(jnp.int32), (n_pad,))   # tiny int pad only

        grid_spec = pltpu.PrefetchScalarGridSpec(
            num_scalar_prefetch=1,
            grid=(pl.cdiv(n, gsz),),
            in_specs=[pl.BlockSpec(memory_space=pl.ANY)],   # LUT stays in HBM
            out_specs=pl.BlockSpec((gsz, outp), lambda i, ids: (i, 0)),
            scratch_shapes=[pltpu.SemaphoreType.DMA((gsz,))],
        )
        cost = pl.CostEstimate(
            flops=0, transcendentals=0,
            bytes_accessed=4 * n_pad + 2 * n_pad * row_bytes)
        out2d = pl.pallas_call(
            _gather_embed_kernel,
            grid_spec=grid_spec,
            out_shape=jax.ShapeDtypeStruct((n, outp), self._table_p.dtype),
            compiler_params=pltpu.CompilerParams(
                dimension_semantics=("parallel",),
                vmem_limit_bytes=self._vmem_limit),
            cost_estimate=cost,
        )(idsp, self._table_p)
        if outp != self.output_dim:
            out2d = out2d[:, :self.output_dim]
        return out2d

    # ------------------------------- forward ------------------------------ #

    def forward(self, inputs):
        """Linear path:    inputs = (x [B, T, dim] float, mask [B, T])
           Embedding path: inputs = token ids [B, T] int
           Returns (embeds [B, T, output_dim], mask [B, T])."""
        if self.input_token:
            ids = inputs
            b, t = ids.shape
            ids_flat = ids.reshape(b * t)
            if self._use_onehot:
                out2d = self._embed_onehot(ids_flat)
            else:
                out2d = self._embed_gather(ids_flat)
            embeds = out2d.reshape(b, t, self.output_dim)
            if self.padding_idx is not None:
                mask = (ids != self.padding_idx).astype(jnp.int32)
            else:
                mask = jnp.ones((b, t), dtype=jnp.int32)
            return embeds, mask
        else:
            x, mask = inputs
            b, t, d = x.shape
            assert d == self.dim
            out2d = self._linear_forward(x.reshape(b * t, d))
            return out2d.reshape(b, t, self.output_dim), mask

    __call__ = forward


# --------------------------------- main --------------------------------------

if __name__ == "__main__":
    key = jax.random.PRNGKey(0)
    k_lin, k_lin2, k_emb, k_emb2, k_x, k_x2, k_ids, k_ids2 = jax.random.split(key, 8)

    B, T, DIM, OUT = 2, 8, 32, 16
    HIGH = jax.lax.Precision.HIGHEST

    # ---- Linear path (input_token=False), resident weight, f32 ----
    cond_lin = BaseConditioner(DIM, OUT, input_token=False, key=k_lin)
    x = jax.random.normal(k_x, (B, T, DIM), jnp.float32)
    mask = jnp.ones((B, T), dtype=jnp.int32)
    emb_lin, mask_lin = cond_lin((x, mask))
    emb_lin = jax.block_until_ready(emb_lin)
    ref_lin = jnp.dot(x.reshape(B * T, DIM), cond_lin.weight, precision=HIGH) + cond_lin.bias
    assert emb_lin.shape == (B, T, OUT)
    assert mask_lin.shape == (B, T)
    assert jnp.allclose(emb_lin.reshape(B * T, OUT), ref_lin,
                        atol=1e-2, rtol=1e-2), "linear mismatch"

    # ---- Linear path with bf16 MXU operands (pre-cast cached weight), loose tolerance ----
    cond_bf16 = BaseConditioner(DIM, OUT, input_token=False, key=k_lin,
                                compute_dtype=jnp.bfloat16)
    emb_bf16, _ = cond_bf16((x, mask))
    emb_bf16 = jax.block_until_ready(emb_bf16)
    assert jnp.allclose(emb_bf16.reshape(B * T, OUT), ref_lin,
                        atol=6e-2, rtol=6e-2), "bf16 linear mismatch"

    # ---- Linear path, forced K-tiled fallback (exercises the accumulator kernel) ----
    DK = 1024
    cond_kt = BaseConditioner(DK, OUT, input_token=False, key=k_lin2, _force_ktiled=True)
    xk = jax.random.normal(k_x2, (B, T, DK), jnp.float32)
    emb_kt, _ = cond_kt((xk, mask))
    emb_kt = jax.block_until_ready(emb_kt)
    ref_kt = jnp.dot(xk.reshape(B * T, DK), cond_kt.weight, precision=HIGH) + cond_kt.bias
    assert jnp.allclose(emb_kt.reshape(B * T, OUT), ref_kt,
                        atol=2e-2, rtol=2e-2), "k-tiled linear mismatch"

    # ---- Embedding path, small vocab -> one-hot MXU kernel ----
    cond_emb = BaseConditioner(DIM, OUT, input_token=True, padding_idx=0, key=k_emb)
    ids = jax.random.randint(k_ids, (B, T), 0, DIM, dtype=jnp.int32)
    emb_tok, mask_tok = cond_emb(ids)
    emb_tok = jax.block_until_ready(emb_tok)
    ref_emb = cond_emb.emb_table[ids.reshape(-1)]
    assert emb_tok.shape == (B, T, OUT)
    assert mask_tok.shape == (B, T)
    assert jnp.allclose(emb_tok.reshape(B * T, OUT), ref_emb, atol=1e-5), "embedding mismatch"

    # ---- Embedding path, large vocab -> scalar-prefetch DMA row-gather (into o_ref) ----
    VOCAB = 2048
    cond_big = BaseConditioner(VOCAB, OUT, input_token=True, padding_idx=0, key=k_emb2)
    ids_big = jax.random.randint(k_ids2, (B, T), 0, VOCAB, dtype=jnp.int32)
    emb_big, _ = cond_big(ids_big)
    emb_big = jax.block_until_ready(emb_big)
    ref_big = cond_big.emb_table[ids_big.reshape(-1)]
    assert emb_big.shape == (B, T, OUT)
    assert jnp.allclose(emb_big.reshape(B * T, OUT), ref_big, atol=1e-6), "gather mismatch"

    print("KERNEL_OK")
</pallas_src>

<mosaic_0001>
module attributes {stable_mosaic.version = 11 : i64} {
  func.func @_linear_resident_kernel(%arg0: i32, %arg1: memref<16x32xf32, #tpu.memory_space<vmem>>, %arg2: memref<32x128xf32, #tpu.memory_space<vmem>>, %arg3: memref<1x128xf32, #tpu.memory_space<vmem>>, %arg4: memref<16x128xf32, #tpu.memory_space<vmem>>) attributes {dimension_semantics = [#tpu.dimension_semantics<parallel>], iteration_bounds = array<i64: 1>, scalar_prefetch = 0 : i64, scratch_operands = 0 : i64, tpu.core_type = #tpu.core_type<tc>, window_params = [{transform_indices = @transform_0, window_bounds = array<i64: 16, 32>}, {pipeline_mode = #tpu.pipeline_mode<synchronous>, transform_indices = @transform_1, window_bounds = array<i64: 32, 128>}, {pipeline_mode = #tpu.pipeline_mode<synchronous>, transform_indices = @transform_2, window_bounds = array<i64: 1, 128>}, {transform_indices = @transform_3, window_bounds = array<i64: 16, 128>}]} {
    %c0 = arith.constant 0 : index
    %c0_0 = arith.constant 0 : index
    %0 = vector.load %arg1[%c0, %c0_0] : memref<16x32xf32, #tpu.memory_space<vmem>>, vector<16x32xf32>
    %c0_1 = arith.constant 0 : index
    %c0_2 = arith.constant 0 : index
    %1 = vector.load %arg2[%c0_1, %c0_2] : memref<32x128xf32, #tpu.memory_space<vmem>>, vector<32x128xf32>
    %cst = arith.constant dense<0.000000e+00> : vector<16x128xf32>
    %2 = tpu.matmul %0, %1, %cst {dimension_numbers = #tpu.dot_dimension_numbers<[1], [0], [0], [1], [0, 0, 1, 1], [], []>} : vector<16x32xf32>, vector<32x128xf32>, vector<16x128xf32> -> vector<16x128xf32>
    %c0_3 = arith.constant 0 : index
    %c0_4 = arith.constant 0 : index
    %3 = vector.load %arg3[%c0_3, %c0_4] : memref<1x128xf32, #tpu.memory_space<vmem>>, vector<1x128xf32>
    %4 = vector.broadcast %3 : vector<1x128xf32> to vector<16x128xf32>
    %5 = arith.addf %2, %4 : vector<16x128xf32>
    %c0_5 = arith.constant 0 : index
    %c0_6 = arith.constant 0 : index
    %6 = vector.load %arg4[%c0_5, %c0_6] : memref<16x128xf32, #tpu.memory_space<vmem>>, vector<16x128xf32>
    tpu.vector_store %arg4[%c0_5, %c0_6], %5 {strides = array<i32>} : memref<16x128xf32, #tpu.memory_space<vmem>>, vector<16x128xf32>,
    return
  }
  func.func @transform_0(%arg0: i32) -> (i32, i32) {
    %c0_i32 = arith.constant 0 : i32
    %c0_i32_0 = arith.constant 0 : i32
    return %arg0, %c0_i32 : i32, i32
  }
  func.func @transform_1(%arg0: i32) -> (i32, i32) {
    %c0_i32 = arith.constant 0 : i32
    %c0_i32_0 = arith.constant 0 : i32
    %c0_i32_1 = arith.constant 0 : i32
    return %c0_i32, %c0_i32_0 : i32, i32
  }
  func.func @transform_2(%arg0: i32) -> (i32, i32) {
    %c0_i32 = arith.constant 0 : i32
    %c0_i32_0 = arith.constant 0 : i32
    %c0_i32_1 = arith.constant 0 : i32
    return %c0_i32, %c0_i32_0 : i32, i32
  }
  func.func @transform_3(%arg0: i32) -> (i32, i32) {
    %c0_i32 = arith.constant 0 : i32
    %c0_i32_0 = arith.constant 0 : i32
    return %arg0, %c0_i32 : i32, i32
  }
}

</mosaic_0001>

<llo_original>
// kernel: tpu_custom_call.1
$region0: #{tpu_custom_call.1}
  #allocation0 [shape = 'u32[]', space=smem, size = 0x4, offset = 0x4, fixed_abs, tag = 'smem constant byte address 0x4 - core index']
  #allocation1 [shape = 'u32[144,128]{1,0:T(1,128)}', space=vmem, size = 0x12000, scoped, tag = 'internal scratch']
  %s0 = inlined_call_operand.hbm [shape: f32[16,32], index: 0, kind: input, shape index: {}]
  %s1 = inlined_call_operand.hbm [shape: f32[32,128], index: 1, kind: input, shape index: {}]
  %s2 = inlined_call_operand.vmem [shape: f32[1,128], index: 2, kind: input, shape index: {}]
  %s3 = inlined_call_operand.hbm [shape: f32[16,128], index: 3, kind: output, shape index: {}]
  %s4 = sld [smem:[#allocation0]]
  $region30: #{tpu_custom_call.1} parent=0
    _
  %s6 = ssub.s32 1, %s4
  %s7 = scalar_select 0, %s6, %s4
  $region1: #{tpu_custom_call.1} parent=0
    #allocation2 [shape = 'u8[8192]{0}', space=vmem, size = 0x2000, scoped, tag = 'input window, operand 0, single buffered']
    #allocation3 [shape = 's32[1]{0}', space=sflag, size = 0x4, scoped, tag = 'scoped memory for tpu_custom_call.1']
    #allocation4 [shape = 's32[1]{0}', space=sflag, size = 0x4, scoped, tag = 'scoped memory for tpu_custom_call.1']
    #allocation5 [shape = 'u8[16384]{0}', space=vmem, size = 0x4000, scoped, tag = 'input window, operand 1, single buffered']
    #allocation6 [shape = 's32[1]{0}', space=sflag, size = 0x4, scoped, tag = 'scoped memory for tpu_custom_call.1']
    #allocation7 [shape = 'u8[8192]{0}', space=vmem, size = 0x2000, scoped, tag = 'output window, operand 0, single buffered']
    %8 = vsyncpa [#allocation3], 0
    %9 = vsyncpa [#allocation6], 0
    %10 = vsyncpa [#allocation4], 0
    // Predicated region
    $region2: #{tpu_custom_call.1} parent=1 // pred_check
      _
    $region3: #{tpu_custom_call.1} parent=1 // pred_check_branch
      %12 = sbr.rel (0) target = $region5
    $region4: #{tpu_custom_call.1} parent=1 // pred_region
      %s14 = ssub.s32 256, 256
      %15 = vsyncadd [#allocation3], %s14
      %s16 = sshll.u32 [#allocation2], 4
      %s17 = int_to_ptr.vmem [resolvable:$true] %s16
      %22 = dma.hbm_to_vmem [thread:$0]  %s0, 256, %s17, [#allocation3], 128, 128, 8
    $region5: #{tpu_custom_call.1} parent=1 // pred_fallthru
      _
    // Predicated region
    $region6: #{tpu_custom_call.1} parent=1 // pred_check
      _
    $region7: #{tpu_custom_call.1} parent=1 // pred_check_branch
      %24 = sbr.rel (0) target = $region9
    $region8: #{tpu_custom_call.1} parent=1 // pred_region
      %s26 = ssub.s32 512, 512
      %27 = vsyncadd [#allocation6], %s26
      %s28 = sshll.u32 [#allocation5], 4
      %s29 = int_to_ptr.vmem [resolvable:$true] %s28
      %34 = dma.hbm_to_vmem [thread:$0]  %s1, 512, %s29, [#allocation6], 128, 128, 8
    $region9: #{tpu_custom_call.1} parent=1 // pred_fallthru
      _
    // Predicated region
    $region10: #{tpu_custom_call.1} parent=1 // pred_check
      _
    $region11: #{tpu_custom_call.1} parent=1 // pred_check_branch
      %36 = sbr.rel (0) target = $region13
    $region12: #{tpu_custom_call.1} parent=1 // pred_region
      _
    $region13: #{tpu_custom_call.1} parent=1 // pred_fallthru
      _
    // Predicated region
    $region14: #{tpu_custom_call.1} parent=1 // pred_check
      _
    $region15: #{tpu_custom_call.1} parent=1 // pred_check_branch
      %38 = sbr.rel (0) target = $region17
    $region16: #{tpu_custom_call.1} parent=1 // pred_region
      %39 = dma.done [#allocation3], 256
    $region17: #{tpu_custom_call.1} parent=1 // pred_fallthru
      _
    // Predicated region
    $region18: #{tpu_custom_call.1} parent=1 // pred_check
      _
    $region19: #{tpu_custom_call.1} parent=1 // pred_check_branch
      %41 = sbr.rel (0) target = $region21
    $region20: #{tpu_custom_call.1} parent=1 // pred_region
      %42 = dma.done [#allocation6], 512
    $region21: #{tpu_custom_call.1} parent=1 // pred_fallthru
      _
    %v43 = vld [vmem:[#allocation2] sm:$0xff]
    %v44 = vld [vmem:[#allocation2 + $0x8] sm:$0xff]
    %v45 = vld [vmem:[#allocation5] sm:$0xff]
    %v46 = vld [vmem:[#allocation5 + $0x8] sm:$0xff]
    %v47 = vld [vmem:[#allocation5 + $0x10] sm:$0xff]
    %v48 = vld [vmem:[#allocation5 + $0x18] sm:$0xff]
    %v49 = vld [vmem:[%s2] sm:$0x1]
    %v51 = vlaneseq
    %v52 = vshrl.u32 %v51, 7
    %v53 = vsub.s32 0, %v52
    %v54 = vrot.slane %v49, %v53
    %vm56 = vcmask 261120
    %v58 = vsel %vm56, %v43, 0
    %v61 = vsel %vm56, %v44, 0
    %63 = vmatprep.subr.mxu0 0.0
    %64 = vmatpush1.msra.mxu0 %v45
    %65 = vmatprep.subr.mxu0 0.0
    %66 = vmatpush1.msra.mxu0 %v46
    %67 = vmatprep.subr.mxu0 0.0
    %68 = vmatpush1.msra.mxu0 %v47
    %69 = vmatprep.subr.mxu0 0.0
    %70 = vmatpush1.msra.mxu0 %v48
    %71 = vmatprep.subr.mxu0 0.0
    %72 = vmatpush1.msra.mxu0 0.0
    %73 = vmatprep.subr.mxu0 0.0
    %74 = vmatpush1.msra.mxu0 0.0
    %75 = vmatprep.subr.mxu0 0.0
    %76 = vmatpush1.msra.mxu0 0.0
    %77 = vmatprep.subr.mxu0 0.0
    %78 = vmatpush1.msra.mxu0 0.0
    %79 = vmatprep.subr.mxu0 0.0
    %80 = vmatpush1.msra.mxu0 0.0
    %81 = vmatprep.subr.mxu0 0.0
    %82 = vmatpush1.msra.mxu0 0.0
    %83 = vmatprep.subr.mxu0 0.0
    %84 = vmatpush1.msra.mxu0 0.0
    %85 = vmatprep.subr.mxu0 0.0
    %86 = vmatpush1.msra.mxu0 0.0
    %87 = vmatprep.subr.mxu0 0.0
    %88 = vmatpush1.msra.mxu0 0.0
    %89 = vmatprep.subr.mxu0 0.0
    %90 = vmatpush1.msra.mxu0 0.0
    %91 = vmatprep.subr.mxu0 0.0
    %92 = vmatpush1.msra.mxu0 0.0
    %93 = vmatprep.subr.mxu0 0.0
    %94 = vmatpush1.msra.mxu0 0.0
    %95 = vmatprep.subr.mxu0 0.0
    %96 = vmatpush1.msra.mxu0 0.0
    %97 = vmatprep.subr.mxu0 0.0
    %98 = vmatpush1.msra.mxu0 0.0
    %99 = vmatprep.subr.mxu0 0.0
    %100 = vmatpush1.msra.mxu0 0.0
    %101 = vmatprep.subr.mxu0 0.0
    %102 = vmatpush1.msra.mxu0 0.0
    %103 = vmatprep.subr.mxu0 0.0
    %104 = vmatpush1.msra.mxu0 0.0
    %105 = vmatprep.subr.mxu0 0.0
    %106 = vmatpush1.msra.mxu0 0.0
    %107 = vmatprep.subr.mxu0 0.0
    %108 = vmatpush1.msra.mxu0 0.0
    %109 = vmatprep.subr.mxu0 0.0
    %110 = vmatpush1.msra.mxu0 0.0
    %111 = vmatprep.subr.mxu0 0.0
    %112 = vmatpush1.msra.mxu0 0.0
    %113 = vmatprep.subr.mxu0 0.0
    %114 = vmatpush1.msra.mxu0 0.0
    %115 = vmatprep.subr.mxu0 0.0
    %116 = vmatpush1.msra.mxu0 0.0
    %117 = vmatprep.subr.mxu0 0.0
    %118 = vmatpush1.msra.mxu0 0.0
    %119 = vmatprep.subr.mxu0 0.0
    %120 = vmatpush1.msra.mxu0 0.0
    %121 = vmatprep.subr.mxu0 0.0
    %122 = vmatpush1.msra.mxu0 0.0
    %123 = vmatprep.subr.mxu0 0.0
    %124 = vmatpush1.msra.mxu0 0.0
    %125 = vmatprep.subr.mxu0 0.0
    %126 = vmatpush1.msra.mxu0 0.0
    %127 = vmatprep.mubr.f32.mxu0 0.0
    %128 = vmatmul.mubr.f32.gmra.mrb[0].mxu0 %v58
    %v129 = vpop.f32.mrb[0].mxu0
    %v130 = vadd.f32 %v54, %v129
    %v131 = vpop.f32.mrb[0].mxu0
    %132 = vmatprep.mubr.f32.mxu0 0.0
    %133 = vmatmul.mubr.f32.gmra.mrb[0].mxu0 %v61
    %v134 = vpop.f32.mrb[0].mxu0
    %v135 = vadd.f32 %v54, %v134
    %v136 = vpop.f32.mrb[0].mxu0
    %137 = vdwg.mxu0
    %138 = vst [vmem:[#allocation7] sm:$0xff] %v130
    %139 = vst [vmem:[#allocation7 + $0x8] sm:$0xff] %v135
    // Predicated region
    $region22: #{tpu_custom_call.1} parent=1 // pred_check
      _
    $region23: #{tpu_custom_call.1} parent=1 // pred_check_branch
      %141 = sbr.rel (0) target = $region25
    $region24: #{tpu_custom_call.1} parent=1 // pred_region
      %s143 = ssub.s32 256, 256
      %144 = vsyncadd [#allocation4], %s143
      %s145 = sshll.u32 [#allocation7], 4
      %s146 = int_to_ptr.vmem [resolvable:$true] %s145
      %151 = dma.vmem_to_hbm [thread:$0]  %s146, 256, %s3, [#allocation4], 128, 128, 8
    $region25: #{tpu_custom_call.1} parent=1 // pred_fallthru
      _
    // Predicated region
    $region26: #{tpu_custom_call.1} parent=1 // pred_check
      _
    $region27: #{tpu_custom_call.1} parent=1 // pred_check_branch
      %153 = sbr.rel (0) target = $region29
    $region28: #{tpu_custom_call.1} parent=1 // pred_region
      %154 = dma.done [#allocation4], 256
    $region29: #{tpu_custom_call.1} parent=1 // pred_fallthru
      _
    %155 = vsyncpa [#allocation3], 1
    %156 = vsyncpa [#allocation6], 1
    %157 = vsyncpa [#allocation4], 1

</llo_original>
